<compile_context>
chip_gen: v7x
topology: tpu7x:2x2x1
jax: 0.10.0
libtpu: 0.0.40
codegen_flags: <defaults>
</compile_context>

<pallas_src>
import jax
import jax.numpy as jnp
from jax.experimental import pallas as pl
from jax.experimental.pallas import tpu as pltpu


def al_sp_kernel(x_ref, att_ref, wc_ref, bc_ref,
                 w1a_ref, w1b_ref, b1_ref, w2_ref, b2_ref, out_ref):
    x = x_ref[...]                                    # (Bt, C, F), lane-dense (F last)
    _, C, _ = x_ref.shape
    xf = x.astype(jnp.float32)

    # ---- channel pooling: Conv2d(C, 1, 1) as a VPU weighted sum over C rows ----
    pooled = wc_ref[0] * xf[:, 0, :]                  # scalar (SMEM) * (Bt, F)
    for c in range(1, C):                             # static unroll, C is tiny
        pooled = pooled + wc_ref[c] * xf[:, c, :]
    pooled = pooled + bc_ref[0]                       # (Bt, F)

    # ---- FC1 on cat([attention, pooled]) as split matmul, + ReLU ----
    att = att_ref[...].astype(jnp.float32)            # (Bt, A)
    h1 = (jnp.dot(att, w1a_ref[...], preferred_element_type=jnp.float32)
          + jnp.dot(pooled, w1b_ref[...], preferred_element_type=jnp.float32)
          + b1_ref[...])                              # (Bt, F//16)
    h1 = jnp.maximum(h1, 0.0)

    # ---- FC2 + sigmoid -> spatial gate ----
    h2 = jnp.dot(h1, w2_ref[...], preferred_element_type=jnp.float32) + b2_ref[...]
    gate = jax.nn.sigmoid(h2)                         # (Bt, F)

    # ---- broadcast gate over channels and multiply ----
    out_ref[...] = (gate[:, None, :] * x).astype(out_ref.dtype)


def al_sp_forward(inputs, attention, params):
    B, C, H, W = inputs.shape
    A = attention.shape[1]
    F = H * W                                         # feature_in_size (H == W)
    Fh = F // 16

    # Wrapper-side layout plumbing: lane-dense (B, C, H*W).
    x = inputs.reshape(B, C, F)

    # Parameter reshapes / transposes (PyTorch Linear stores (out, in)).
    wc = params["conv_w"].reshape(C).astype(jnp.float32)        # (C,) scalars -> SMEM
    bc = params["conv_b"].reshape(1).astype(jnp.float32)        # (1,) scalar  -> SMEM
    w1t = params["fc1_w"].T.astype(jnp.float32)                 # (A+F, F//16)
    w1a = w1t[:A]                                               # attention slice
    w1b = w1t[A:]                                               # pooled-feature slice
    b1 = params["fc1_b"].reshape(1, Fh).astype(jnp.float32)
    w2t = params["fc2_w"].T.astype(jnp.float32)                 # (F//16, F)
    b2 = params["fc2_b"].reshape(1, F).astype(jnp.float32)

    # Batch tiling: whole batch in one step when B is small / not 8-aligned;
    # otherwise multiple-of-8 tiles so a parallel grid can shard across TCs (v7x).
    if B % 8 == 0:
        bt = 8
        while bt * 2 <= 128 and B % (bt * 2) == 0:
            bt *= 2
    else:
        bt = B
    grid = (B // bt,)

    smem_spec = pl.BlockSpec(memory_space=pltpu.MemorySpace.SMEM)

    out_flat = pl.pallas_call(
        al_sp_kernel,
        out_shape=jax.ShapeDtypeStruct((B, C, F), inputs.dtype),
        grid_spec=pltpu.PrefetchScalarGridSpec(
            num_scalar_prefetch=0,
            grid=grid,
            in_specs=[
                pl.BlockSpec((bt, C, F), lambda i: (i, 0, 0)),   # inputs, lane-dense
                pl.BlockSpec((bt, A), lambda i: (i, 0)),         # attention tile
                smem_spec,                                       # conv weight (C,)
                smem_spec,                                       # conv bias (1,)
                pl.BlockSpec((A, Fh), lambda i: (0, 0)),         # W1 (attention part)
                pl.BlockSpec((F, Fh), lambda i: (0, 0)),         # W1 (pooled part)
                pl.BlockSpec((1, Fh), lambda i: (0, 0)),         # b1
                pl.BlockSpec((Fh, F), lambda i: (0, 0)),         # W2
                pl.BlockSpec((1, F), lambda i: (0, 0)),          # b2
            ],
            out_specs=pl.BlockSpec((bt, C, F), lambda i: (i, 0, 0)),
        ),
        compiler_params=pltpu.CompilerParams(
            dimension_semantics=("parallel",)),
    )(x, attention, wc, bc, w1a, w1b, b1, w2t, b2)

    return out_flat.reshape(B, C, H, W)


def al_sp_reference(inputs, attention, params):
    """Pure-JAX reference mirroring the PyTorch forward."""
    B, C, H, W = inputs.shape
    cp = (jnp.einsum('bchw,c->bhw', inputs, params["conv_w"].reshape(C))
          + params["conv_b"].reshape(1, 1, 1))                        # (B, H, W)
    pooled = cp.reshape(B, -1)                                        # (B, H*W)
    in_fc = jnp.concatenate([attention, pooled], axis=1)
    h1 = jax.nn.relu(in_fc @ params["fc1_w"].T + params["fc1_b"])
    h2 = jax.nn.sigmoid(h1 @ params["fc2_w"].T + params["fc2_b"])
    gate = h2.reshape(B, 1, H, W)
    return gate * inputs


if __name__ == "__main__":
    # Small shapes implied by the module: H == W, feature_in_size == H*W.
    B, C, H, W = 2, 4, 16, 16
    A = 32                      # attention_size
    F = H * W                   # feature_in_size = 256
    Fh = F // 16                # 16

    key = jax.random.PRNGKey(0)
    ks = jax.random.split(key, 8)
    params = {
        "conv_w": jax.random.normal(ks[0], (1, C, 1, 1), jnp.float32) * 0.1,
        "conv_b": jax.random.normal(ks[1], (1,), jnp.float32) * 0.1,
        "fc1_w": jax.random.normal(ks[2], (Fh, F + A), jnp.float32) * 0.05,
        "fc1_b": jax.random.normal(ks[3], (Fh,), jnp.float32) * 0.05,
        "fc2_w": jax.random.normal(ks[4], (F, Fh), jnp.float32) * 0.05,
        "fc2_b": jax.random.normal(ks[5], (F,), jnp.float32) * 0.05,
    }
    inputs = jax.random.normal(ks[6], (B, C, H, W), jnp.float32)
    attention = jax.random.normal(ks[7], (B, A), jnp.float32)

    out = al_sp_forward(inputs, attention, params)
    out = jax.block_until_ready(out)

    ref = al_sp_reference(inputs, attention, params)
    assert out.shape == (B, C, H, W)
    assert jnp.allclose(out, ref, rtol=1e-4, atol=1e-4), "mismatch vs pure-JAX reference"

    print("KERNEL_OK")
</pallas_src>

<mosaic_0001>
module attributes {stable_mosaic.version = 11 : i64} {
  func.func @al_sp_kernel(%arg0: i32, %arg1: memref<2x4x256xf32, #tpu.memory_space<vmem>>, %arg2: memref<2x32xf32, #tpu.memory_space<vmem>>, %arg3: memref<4xf32, #tpu.memory_space<smem>>, %arg4: memref<1xf32, #tpu.memory_space<smem>>, %arg5: memref<32x16xf32, #tpu.memory_space<vmem>>, %arg6: memref<256x16xf32, #tpu.memory_space<vmem>>, %arg7: memref<1x16xf32, #tpu.memory_space<vmem>>, %arg8: memref<16x256xf32, #tpu.memory_space<vmem>>, %arg9: memref<1x256xf32, #tpu.memory_space<vmem>>, %arg10: memref<2x4x256xf32, #tpu.memory_space<vmem>>) attributes {dimension_semantics = [#tpu.dimension_semantics<parallel>], iteration_bounds = array<i64: 1>, scalar_prefetch = 0 : i64, scratch_operands = 0 : i64, tpu.core_type = #tpu.core_type<tc>, window_params = [{transform_indices = @transform_0, window_bounds = array<i64: 2, 4, 256>}, {transform_indices = @transform_1, window_bounds = array<i64: 2, 32>}, {transform_indices = @transform_2, window_bounds = array<i64: 4>}, {transform_indices = @transform_3, window_bounds = array<i64: 1>}, {pipeline_mode = #tpu.pipeline_mode<synchronous>, transform_indices = @transform_4, window_bounds = array<i64: 32, 16>}, {pipeline_mode = #tpu.pipeline_mode<synchronous>, transform_indices = @transform_5, window_bounds = array<i64: 256, 16>}, {pipeline_mode = #tpu.pipeline_mode<synchronous>, transform_indices = @transform_6, window_bounds = array<i64: 1, 16>}, {pipeline_mode = #tpu.pipeline_mode<synchronous>, transform_indices = @transform_7, window_bounds = array<i64: 16, 256>}, {pipeline_mode = #tpu.pipeline_mode<synchronous>, transform_indices = @transform_8, window_bounds = array<i64: 1, 256>}, {transform_indices = @transform_9, window_bounds = array<i64: 2, 4, 256>}]} {
    %c0 = arith.constant 0 : index
    %c0_0 = arith.constant 0 : index
    %c0_1 = arith.constant 0 : index
    %0 = vector.load %arg1[%c0, %c0_0, %c0_1] : memref<2x4x256xf32, #tpu.memory_space<vmem>>, vector<2x4x256xf32>
    %c0_2 = arith.constant 0 : index
    %1 = memref.load %arg3[%c0_2] : memref<4xf32, #tpu.memory_space<smem>>
    %2 = vector.extract_strided_slice %0 {offsets = [0, 0, 0], sizes = [2, 1, 256], strides = [1, 1, 1]} : vector<2x4x256xf32> to vector<2x1x256xf32>
    %3 = vector.shape_cast %2 : vector<2x1x256xf32> to vector<2x256xf32>
    %4 = vector.broadcast %1 : f32 to vector<2x256xf32>
    %5 = arith.mulf %4, %3 : vector<2x256xf32>
    %c1 = arith.constant 1 : index
    %6 = memref.load %arg3[%c1] : memref<4xf32, #tpu.memory_space<smem>>
    %7 = vector.extract_strided_slice %0 {offsets = [0, 1, 0], sizes = [2, 1, 256], strides = [1, 1, 1]} : vector<2x4x256xf32> to vector<2x1x256xf32>
    %8 = vector.shape_cast %7 : vector<2x1x256xf32> to vector<2x256xf32>
    %9 = vector.broadcast %6 : f32 to vector<2x256xf32>
    %10 = arith.mulf %9, %8 : vector<2x256xf32>
    %11 = arith.addf %5, %10 : vector<2x256xf32>
    %c2 = arith.constant 2 : index
    %12 = memref.load %arg3[%c2] : memref<4xf32, #tpu.memory_space<smem>>
    %13 = vector.extract_strided_slice %0 {offsets = [0, 2, 0], sizes = [2, 1, 256], strides = [1, 1, 1]} : vector<2x4x256xf32> to vector<2x1x256xf32>
    %14 = vector.shape_cast %13 : vector<2x1x256xf32> to vector<2x256xf32>
    %15 = vector.broadcast %12 : f32 to vector<2x256xf32>
    %16 = arith.mulf %15, %14 : vector<2x256xf32>
    %17 = arith.addf %11, %16 : vector<2x256xf32>
    %c3 = arith.constant 3 : index
    %18 = memref.load %arg3[%c3] : memref<4xf32, #tpu.memory_space<smem>>
    %19 = vector.extract_strided_slice %0 {offsets = [0, 3, 0], sizes = [2, 1, 256], strides = [1, 1, 1]} : vector<2x4x256xf32> to vector<2x1x256xf32>
    %20 = vector.shape_cast %19 : vector<2x1x256xf32> to vector<2x256xf32>
    %21 = vector.broadcast %18 : f32 to vector<2x256xf32>
    %22 = arith.mulf %21, %20 : vector<2x256xf32>
    %23 = arith.addf %17, %22 : vector<2x256xf32>
    %c0_3 = arith.constant 0 : index
    %24 = memref.load %arg4[%c0_3] : memref<1xf32, #tpu.memory_space<smem>>
    %25 = vector.broadcast %24 : f32 to vector<2x256xf32>
    %26 = arith.addf %23, %25 : vector<2x256xf32>
    %c0_4 = arith.constant 0 : index
    %c0_5 = arith.constant 0 : index
    %27 = vector.load %arg2[%c0_4, %c0_5] : memref<2x32xf32, #tpu.memory_space<vmem>>, vector<2x32xf32>
    %c0_6 = arith.constant 0 : index
    %c0_7 = arith.constant 0 : index
    %28 = vector.load %arg5[%c0_6, %c0_7] : memref<32x16xf32, #tpu.memory_space<vmem>>, vector<32x16xf32>
    %cst = arith.constant dense<0.000000e+00> : vector<2x16xf32>
    %29 = tpu.matmul %27, %28, %cst {dimension_numbers = #tpu.dot_dimension_numbers<[1], [0], [0], [1], [0, 0, 1, 1], [], []>} : vector<2x32xf32>, vector<32x16xf32>, vector<2x16xf32> -> vector<2x16xf32>
    %c0_8 = arith.constant 0 : index
    %c0_9 = arith.constant 0 : index
    %30 = vector.load %arg6[%c0_8, %c0_9] : memref<256x16xf32, #tpu.memory_space<vmem>>, vector<256x16xf32>
    %cst_10 = arith.constant dense<0.000000e+00> : vector<2x16xf32>
    %31 = tpu.matmul %26, %30, %cst_10 {dimension_numbers = #tpu.dot_dimension_numbers<[1], [0], [0], [1], [0, 0, 1, 1], [], []>} : vector<2x256xf32>, vector<256x16xf32>, vector<2x16xf32> -> vector<2x16xf32>
    %32 = arith.addf %29, %31 : vector<2x16xf32>
    %c0_11 = arith.constant 0 : index
    %c0_12 = arith.constant 0 : index
    %33 = vector.load %arg7[%c0_11, %c0_12] : memref<1x16xf32, #tpu.memory_space<vmem>>, vector<1x16xf32>
    %34 = vector.broadcast %33 : vector<1x16xf32> to vector<2x16xf32>
    %35 = arith.addf %32, %34 : vector<2x16xf32>
    %cst_13 = arith.constant 0.000000e+00 : f32
    %36 = vector.broadcast %cst_13 : f32 to vector<2x16xf32>
    %37 = arith.maximumf %35, %36 : vector<2x16xf32>
    %c0_14 = arith.constant 0 : index
    %c0_15 = arith.constant 0 : index
    %38 = vector.load %arg8[%c0_14, %c0_15] : memref<16x256xf32, #tpu.memory_space<vmem>>, vector<16x256xf32>
    %cst_16 = arith.constant dense<0.000000e+00> : vector<2x256xf32>
    %39 = tpu.matmul %37, %38, %cst_16 {dimension_numbers = #tpu.dot_dimension_numbers<[1], [0], [0], [1], [0, 0, 1, 1], [], []>} : vector<2x16xf32>, vector<16x256xf32>, vector<2x256xf32> -> vector<2x256xf32>
    %c0_17 = arith.constant 0 : index
    %c0_18 = arith.constant 0 : index
    %40 = vector.load %arg9[%c0_17, %c0_18] : memref<1x256xf32, #tpu.memory_space<vmem>>, vector<1x256xf32>
    %41 = vector.broadcast %40 : vector<1x256xf32> to vector<2x256xf32>
    %42 = arith.addf %39, %41 : vector<2x256xf32>
    %43 = arith.negf %42 : vector<2x256xf32>
    %44 = math.exp %43 : vector<2x256xf32>
    %cst_19 = arith.constant 1.000000e+00 : f32
    %45 = vector.broadcast %cst_19 : f32 to vector<2x256xf32>
    %46 = arith.addf %45, %44 : vector<2x256xf32>
    %47 = arith.divf %45, %46 : vector<2x256xf32>
    %48 = vector.shape_cast %47 : vector<2x256xf32> to vector<2x1x256xf32>
    %49 = vector.broadcast %48 : vector<2x1x256xf32> to vector<2x4x256xf32>
    %50 = arith.mulf %49, %0 : vector<2x4x256xf32>
    %c0_20 = arith.constant 0 : index
    %c0_21 = arith.constant 0 : index
    %c0_22 = arith.constant 0 : index
    %51 = vector.load %arg10[%c0_20, %c0_21, %c0_22] : memref<2x4x256xf32, #tpu.memory_space<vmem>>, vector<2x4x256xf32>
    tpu.vector_store %arg10[%c0_20, %c0_21, %c0_22], %50 {strides = array<i32>} : memref<2x4x256xf32, #tpu.memory_space<vmem>>, vector<2x4x256xf32>,
    return
  }
  func.func @transform_0(%arg0: i32) -> (i32, i32, i32) {
    %c0_i32 = arith.constant 0 : i32
    %c0_i32_0 = arith.constant 0 : i32
    %c0_i32_1 = arith.constant 0 : i32
    return %arg0, %c0_i32, %c0_i32_0 : i32, i32, i32
  }
  func.func @transform_1(%arg0: i32) -> (i32, i32) {
    %c0_i32 = arith.constant 0 : i32
    %c0_i32_0 = arith.constant 0 : i32
    return %arg0, %c0_i32 : i32, i32
  }
  func.func @transform_2(%arg0: i32) -> i32 {
    %c0_i32 = arith.constant 0 : i32
    %c0_i32_0 = arith.constant 0 : i32
    return %c0_i32 : i32
  }
  func.func @transform_3(%arg0: i32) -> i32 {
    %c0_i32 = arith.constant 0 : i32
    %c0_i32_0 = arith.constant 0 : i32
    return %c0_i32 : i32
  }
  func.func @transform_4(%arg0: i32) -> (i32, i32) {
    %c0_i32 = arith.constant 0 : i32
    %c0_i32_0 = arith.constant 0 : i32
    %c0_i32_1 = arith.constant 0 : i32
    return %c0_i32, %c0_i32_0 : i32, i32
  }
  func.func @transform_5(%arg0: i32) -> (i32, i32) {
    %c0_i32 = arith.constant 0 : i32
    %c0_i32_0 = arith.constant 0 : i32
    %c0_i32_1 = arith.constant 0 : i32
    return %c0_i32, %c0_i32_0 : i32, i32
  }
  func.func @transform_6(%arg0: i32) -> (i32, i32) {
    %c0_i32 = arith.constant 0 : i32
    %c0_i32_0 = arith.constant 0 : i32
    %c0_i32_1 = arith.constant 0 : i32
    return %c0_i32, %c0_i32_0 : i32, i32
  }
  func.func @transform_7(%arg0: i32) -> (i32, i32) {
    %c0_i32 = arith.constant 0 : i32
    %c0_i32_0 = arith.constant 0 : i32
    %c0_i32_1 = arith.constant 0 : i32
    return %c0_i32, %c0_i32_0 : i32, i32
  }
  func.func @transform_8(%arg0: i32) -> (i32, i32) {
    %c0_i32 = arith.constant 0 : i32
    %c0_i32_0 = arith.constant 0 : i32
    %c0_i32_1 = arith.constant 0 : i32
    return %c0_i32, %c0_i32_0 : i32, i32
  }
  func.func @transform_9(%arg0: i32) -> (i32, i32, i32) {
    %c0_i32 = arith.constant 0 : i32
    %c0_i32_0 = arith.constant 0 : i32
    %c0_i32_1 = arith.constant 0 : i32
    return %arg0, %c0_i32, %c0_i32_0 : i32, i32, i32
  }
}

</mosaic_0001>

<llo_original>
// kernel: tpu_custom_call.1
$region0: #{tpu_custom_call.1}
  #allocation0 [shape = 'u32[]', space=smem, size = 0x4, offset = 0x4, fixed_abs, tag = 'smem constant byte address 0x4 - core index']
  #allocation1 [shape = 'u32[144,128]{1,0:T(1,128)}', space=vmem, size = 0x12000, scoped, tag = 'internal scratch']
  #allocation2 [shape = 'f32[1]{0:T(128)S(6)}', space=smem, size = 0x200, scoped, tag = 'scoped memory for tpu_custom_call.1']
  %s0 = inlined_call_operand.vmem [shape: f32[2,4,256], index: 0, kind: input, shape index: {}]
  %s1 = inlined_call_operand.vmem [shape: f32[2,32], index: 1, kind: input, shape index: {}]
  %s2 = inlined_call_operand.vmem [shape: f32[4], index: 2, kind: input, shape index: {}]
  %s3 = inlined_call_operand.<no memory space> [shape: f32[1], index: 3, kind: input, shape index: {}]
  %s4 = inlined_call_operand.vmem [shape: f32[32,16], index: 4, kind: input, shape index: {}]
  %s5 = inlined_call_operand.vmem [shape: f32[256,16], index: 5, kind: input, shape index: {}]
  %s6 = inlined_call_operand.vmem [shape: f32[1,16], index: 6, kind: input, shape index: {}]
  %s7 = inlined_call_operand.vmem [shape: f32[16,256], index: 7, kind: input, shape index: {}]
  %s8 = inlined_call_operand.vmem [shape: f32[1,256], index: 8, kind: input, shape index: {}]
  %s9 = inlined_call_operand.hbm [shape: f32[2,4,256], index: 9, kind: output, shape index: {}]
  %s10 = sld [smem:[#allocation0]]
  $region50: #{tpu_custom_call.1} parent=0
    _
  %s12 = ssub.s32 1, %s10
  %s13 = scalar_select 0, %s12, %s10
  %14 = sst [smem:[#allocation2]] %s3
  $region1: #{tpu_custom_call.1} parent=0
    #allocation3 [shape = 'u8[512]{0}', space=smem, size = 0x200, scoped, tag = 'input window, operand 2, single buffered']
    #allocation4 [shape = 's32[1]{0}', space=sflag, size = 0x4, scoped, tag = 'scoped memory for tpu_custom_call.1']
    #allocation5 [shape = 's32[1]{0}', space=sflag, size = 0x4, scoped, tag = 'scoped memory for tpu_custom_call.1']
    #allocation6 [shape = 'u8[8192]{0}', space=vmem, size = 0x2000, scoped, tag = 'output window, operand 0, single buffered']
    %15 = vsyncpa [#allocation5], 0
    %16 = vsyncpa [#allocation4], 0
    // Predicated region
    $region2: #{tpu_custom_call.1} parent=1 // pred_check
      _
    $region3: #{tpu_custom_call.1} parent=1 // pred_check_branch
      %18 = sbr.rel (0) target = $region5
    $region4: #{tpu_custom_call.1} parent=1 // pred_region
      _
    $region5: #{tpu_custom_call.1} parent=1 // pred_fallthru
      _
    // Predicated region
    $region6: #{tpu_custom_call.1} parent=1 // pred_check
      _
    $region7: #{tpu_custom_call.1} parent=1 // pred_check_branch
      %20 = sbr.rel (0) target = $region9
    $region8: #{tpu_custom_call.1} parent=1 // pred_region
      _
    $region9: #{tpu_custom_call.1} parent=1 // pred_fallthru
      _
    // Predicated region
    $region10: #{tpu_custom_call.1} parent=1 // pred_check
      _
    $region11: #{tpu_custom_call.1} parent=1 // pred_check_branch
      %22 = sbr.rel (0) target = $region13
    $region12: #{tpu_custom_call.1} parent=1 // pred_region
      %s24 = ssub.s32 16, 16
      %25 = vsyncadd [#allocation5], %s24
      %s27 = sshll.u32 %s2, 4
      %s28 = int_to_ptr.vmem [resolvable:$true] %s27
      %30 = dma.vmem_to_smem %s28, 16, [#allocation3], [#allocation5]
    $region13: #{tpu_custom_call.1} parent=1 // pred_fallthru
      _
    // Predicated region
    $region14: #{tpu_custom_call.1} parent=1 // pred_check
      _
    $region15: #{tpu_custom_call.1} parent=1 // pred_check_branch
      %32 = sbr.rel (0) target = $region17
    $region16: #{tpu_custom_call.1} parent=1 // pred_region
      _
    $region17: #{tpu_custom_call.1} parent=1 // pred_fallthru
      _
    // Predicated region
    $region18: #{tpu_custom_call.1} parent=1 // pred_check
      _
    $region19: #{tpu_custom_call.1} parent=1 // pred_check_branch
      %34 = sbr.rel (0) target = $region21
    $region20: #{tpu_custom_call.1} parent=1 // pred_region
      _
    $region21: #{tpu_custom_call.1} parent=1 // pred_fallthru
      _
    // Predicated region
    $region22: #{tpu_custom_call.1} parent=1 // pred_check
      _
    $region23: #{tpu_custom_call.1} parent=1 // pred_check_branch
      %36 = sbr.rel (0) target = $region25
    $region24: #{tpu_custom_call.1} parent=1 // pred_region
      _
    $region25: #{tpu_custom_call.1} parent=1 // pred_fallthru
      _
    // Predicated region
    $region26: #{tpu_custom_call.1} parent=1 // pred_check
      _
    $region27: #{tpu_custom_call.1} parent=1 // pred_check_branch
      %38 = sbr.rel (0) target = $region29
    $region28: #{tpu_custom_call.1} parent=1 // pred_region
      _
    $region29: #{tpu_custom_call.1} parent=1 // pred_fallthru
      _
    // Predicated region
    $region30: #{tpu_custom_call.1} parent=1 // pred_check
      _
    $region31: #{tpu_custom_call.1} parent=1 // pred_check_branch
      %40 = sbr.rel (0) target = $region33
    $region32: #{tpu_custom_call.1} parent=1 // pred_region
      _
    $region33: #{tpu_custom_call.1} parent=1 // pred_fallthru
      _
    // Predicated region
    $region34: #{tpu_custom_call.1} parent=1 // pred_check
      _
    $region35: #{tpu_custom_call.1} parent=1 // pred_check_branch
      %42 = sbr.rel (0) target = $region37
    $region36: #{tpu_custom_call.1} parent=1 // pred_region
      _
    $region37: #{tpu_custom_call.1} parent=1 // pred_fallthru
      _
    // Predicated region
    $region38: #{tpu_custom_call.1} parent=1 // pred_check
      _
    $region39: #{tpu_custom_call.1} parent=1 // pred_check_branch
      %44 = sbr.rel (0) target = $region41
    $region40: #{tpu_custom_call.1} parent=1 // pred_region
      %45 = dma.done [#allocation5], 16
    $region41: #{tpu_custom_call.1} parent=1 // pred_fallthru
      _
    %46 = sfence
    %v47 = vld [vmem:[%s0] sm:$0xff]
    %v48 = vld [vmem:[%s0 + $0x8] sm:$0xff]
    %s49 = sld [smem:[#allocation3]]
    %v50 = vstv %s49
    %v51 = vmul.f32 %v50, %v47
    %v52 = vmul.f32 %v50, %v48
    %s53 = sld [smem:[#allocation3 + $0x1]]
    %v54 = vstv %s53
    %v55 = vmul.f32 %v54, %v47
    %v56 = vmul.f32 %v54, %v48
    %v59 = vrot.slane %v55, 5
    %v60 = vrot.slane %v59, 4
    %v61 = vrot.slane %v56, 5
    %v62 = vrot.slane %v61, 4
    %v65 = vadd.f32 %v51, %v60
    %v66 = vadd.f32 %v52, %v62
    %s67 = sld [smem:[#allocation3 + $0x2]]
    %v68 = vstv %s67
    %v69 = vmul.f32 %v68, %v47
    %v70 = vmul.f32 %v68, %v48
    %v73 = vrot.slane %v69, 6
    %v74 = vrot.slane %v73, 4
    %v75 = vrot.slane %v70, 6
    %v76 = vrot.slane %v75, 4
    %v79 = vadd.f32 %v65, %v74
    %v80 = vadd.f32 %v66, %v76
    %s81 = sld [smem:[#allocation3 + $0x3]]
    %v82 = vstv %s81
    %v83 = vmul.f32 %v82, %v47
    %v84 = vmul.f32 %v82, %v48
    %v87 = vrot.slane %v83, 7
    %v88 = vrot.slane %v87, 4
    %v89 = vrot.slane %v84, 7
    %v90 = vrot.slane %v89, 4
    %v93 = vadd.f32 %v79, %v88
    %v94 = vadd.f32 %v80, %v90
    %s95 = sld [smem:[#allocation2]]
    %v96 = vstv %s95
    %v97 = vadd.f32 %v93, %v96
    %v98 = vadd.f32 %v94, %v96
    %v99 = vld [vmem:[%s1] sm:$0x3]
    %v100 = vld [vmem:[%s4] sm:$0xff]
    %v101 = vld [vmem:[%s4 + $0x8] sm:$0xff]
    %v102 = vld [vmem:[%s4 + $0x10] sm:$0xff]
    %v103 = vld [vmem:[%s4 + $0x18] sm:$0xff]
    %v104 = vld [vmem:[%s5] sm:$0xff]
    %v105 = vld [vmem:[%s5 + $0x8] sm:$0xff]
    %v106 = vld [vmem:[%s5 + $0x10] sm:$0xff]
    %v107 = vld [vmem:[%s5 + $0x18] sm:$0xff]
    %v108 = vld [vmem:[%s5 + $0x20] sm:$0xff]
    %v109 = vld [vmem:[%s5 + $0x28] sm:$0xff]
    %v110 = vld [vmem:[%s5 + $0x30] sm:$0xff]
    %v111 = vld [vmem:[%s5 + $0x38] sm:$0xff]
    %v112 = vld [vmem:[%s5 + $0x40] sm:$0xff]
    %v113 = vld [vmem:[%s5 + $0x48] sm:$0xff]
    %v114 = vld [vmem:[%s5 + $0x50] sm:$0xff]
    %v115 = vld [vmem:[%s5 + $0x58] sm:$0xff]
    %v116 = vld [vmem:[%s5 + $0x60] sm:$0xff]
    %v117 = vld [vmem:[%s5 + $0x68] sm:$0xff]
    %v118 = vld [vmem:[%s5 + $0x70] sm:$0xff]
    %v119 = vld [vmem:[%s5 + $0x78] sm:$0xff]
    %v120 = vld [vmem:[%s5 + $0x80] sm:$0xff]
    %v121 = vld [vmem:[%s5 + $0x88] sm:$0xff]
    %v122 = vld [vmem:[%s5 + $0x90] sm:$0xff]
    %v123 = vld [vmem:[%s5 + $0x98] sm:$0xff]
    %v124 = vld [vmem:[%s5 + $0xa0] sm:$0xff]
    %v125 = vld [vmem:[%s5 + $0xa8] sm:$0xff]
    %v126 = vld [vmem:[%s5 + $0xb0] sm:$0xff]
    %v127 = vld [vmem:[%s5 + $0xb8] sm:$0xff]
    %v128 = vld [vmem:[%s5 + $0xc0] sm:$0xff]
    %v129 = vld [vmem:[%s5 + $0xc8] sm:$0xff]
    %v130 = vld [vmem:[%s5 + $0xd0] sm:$0xff]
    %v131 = vld [vmem:[%s5 + $0xd8] sm:$0xff]
    %v132 = vld [vmem:[%s5 + $0xe0] sm:$0xff]
    %v133 = vld [vmem:[%s5 + $0xe8] sm:$0xff]
    %v134 = vld [vmem:[%s5 + $0xf0] sm:$0xff]
    %v135 = vld [vmem:[%s5 + $0xf8] sm:$0xff]
    %v138 = vlaneseq
    %v139 = vshrl.u32 %v138, 7
    %v140 = vsub.s32 0, %v139
    %v141 = vrot.slane %v97, %v140
    %v142 = vlaneseq
    %v143 = vshrl.u32 %v142, 7
    %v144 = vsub.s32 4, %v143
    %v145 = vrot.slane %v97, %v144
    %v146 = vlaneseq
    %v147 = vshrl.u32 %v146, 7
    %v148 = vsub.s32 0, %v147
    %v149 = vrot.slane %v98, %v148
    %v150 = vlaneseq
    %v151 = vshrl.u32 %v150, 7
    %v152 = vsub.s32 4, %v151
    %v153 = vrot.slane %v98, %v152
    %vm154 = vcmask 1041409
    %v155 = vsel %vm154, %v149, %v141
    %v156 = vsel %vm154, %v153, %v145
    %159 = vmatprep.subr.mxu0 0.0
    %160 = vmatpush1.msra.mxu0 %v104
    %161 = vmatprep.subr.mxu0 0.0
    %162 = vmatpush1.msra.mxu0 %v105
    %163 = vmatprep.subr.mxu0 0.0
    %164 = vmatpush1.msra.mxu0 %v106
    %165 = vmatprep.subr.mxu0 0.0
    %166 = vmatpush1.msra.mxu0 %v107
    %167 = vmatprep.subr.mxu0 0.0
    %168 = vmatpush1.msra.mxu0 %v108
    %169 = vmatprep.subr.mxu0 0.0
    %170 = vmatpush1.msra.mxu0 %v109
    %171 = vmatprep.subr.mxu0 0.0
    %172 = vmatpush1.msra.mxu0 %v110
    %173 = vmatprep.subr.mxu0 0.0
    %174 = vmatpush1.msra.mxu0 %v111
    %175 = vmatprep.subr.mxu0 0.0
    %176 = vmatpush1.msra.mxu0 %v112
    %177 = vmatprep.subr.mxu0 0.0
    %178 = vmatpush1.msra.mxu0 %v113
    %179 = vmatprep.subr.mxu0 0.0
    %180 = vmatpush1.msra.mxu0 %v114
    %181 = vmatprep.subr.mxu0 0.0
    %182 = vmatpush1.msra.mxu0 %v115
    %183 = vmatprep.subr.mxu0 0.0
    %184 = vmatpush1.msra.mxu0 %v116
    %185 = vmatprep.subr.mxu0 0.0
    %186 = vmatpush1.msra.mxu0 %v117
    %187 = vmatprep.subr.mxu0 0.0
    %188 = vmatpush1.msra.mxu0 %v118
    %189 = vmatprep.subr.mxu0 0.0
    %190 = vmatpush1.msra.mxu0 %v119
    %191 = vmatprep.subr.mxu0 0.0
    %192 = vmatpush1.msra.mxu0 %v120
    %193 = vmatprep.subr.mxu0 0.0
    %194 = vmatpush1.msra.mxu0 %v121
    %195 = vmatprep.subr.mxu0 0.0
    %196 = vmatpush1.msra.mxu0 %v122
    %197 = vmatprep.subr.mxu0 0.0
    %198 = vmatpush1.msra.mxu0 %v123
    %199 = vmatprep.subr.mxu0 0.0
    %200 = vmatpush1.msra.mxu0 %v124
    %201 = vmatprep.subr.mxu0 0.0
    %202 = vmatpush1.msra.mxu0 %v125
    %203 = vmatprep.subr.mxu0 0.0
    %204 = vmatpush1.msra.mxu0 %v126
    %205 = vmatprep.subr.mxu0 0.0
    %206 = vmatpush1.msra.mxu0 %v127
    %207 = vmatprep.subr.mxu0 0.0
    %208 = vmatpush1.msra.mxu0 %v128
    %209 = vmatprep.subr.mxu0 0.0
    %210 = vmatpush1.msra.mxu0 %v129
    %211 = vmatprep.subr.mxu0 0.0
    %212 = vmatpush1.msra.mxu0 %v130
    %213 = vmatprep.subr.mxu0 0.0
    %214 = vmatpush1.msra.mxu0 %v131
    %215 = vmatprep.subr.mxu0 0.0
    %216 = vmatpush1.msra.mxu0 %v132
    %217 = vmatprep.subr.mxu0 0.0
    %218 = vmatpush1.msra.mxu0 %v133
    %219 = vmatprep.subr.mxu0 0.0
    %220 = vmatpush1.msra.mxu0 %v134
    %221 = vmatprep.subr.mxu0 0.0
    %222 = vmatpush1.msra.mxu0 %v135
    %223 = vmatprep.mubr.f32.mxu0 %v156
    %224 = vmatmul.mubr.f32.gmra.mrb[0].mxu0 %v155
    %v225 = vpop.f32.mrb[0].mxu0
    %v226 = vadd.f32 0.0, %v225
    %v227 = vpop.f32.mrb[0].mxu0
    %228 = vdwg.mxu0
    %vm229 = vcmask 261120
    %v231 = vsel %vm229, %v99, 0
    %233 = vmatprep.subr.mxu0 0.0
    %234 = vmatpush1.msra.mxu0 %v100
    %235 = vmatprep.subr.mxu0 0.0
    %236 = vmatpush1.msra.mxu0 %v101
    %237 = vmatprep.subr.mxu0 0.0
    %238 = vmatpush1.msra.mxu0 %v102
    %239 = vmatprep.subr.mxu0 0.0
    %240 = vmatpush1.msra.mxu0 %v103
    %241 = vmatprep.subr.mxu0 0.0
    %242 = vmatpush1.msra.mxu0 0.0
    %243 = vmatprep.subr.mxu0 0.0
    %244 = vmatpush1.msra.mxu0 0.0
    %245 = vmatprep.subr.mxu0 0.0
    %246 = vmatpush1.msra.mxu0 0.0
    %247 = vmatprep.subr.mxu0 0.0
    %248 = vmatpush1.msra.mxu0 0.0
    %249 = vmatprep.subr.mxu0 0.0
    %250 = vmatpush1.msra.mxu0 0.0
    %251 = vmatprep.subr.mxu0 0.0
    %252 = vmatpush1.msra.mxu0 0.0
    %253 = vmatprep.subr.mxu0 0.0
    %254 = vmatpush1.msra.mxu0 0.0
    %255 = vmatprep.subr.mxu0 0.0
    %256 = vmatpush1.msra.mxu0 0.0
    %257 = vmatprep.subr.mxu0 0.0
    %258 = vmatpush1.msra.mxu0 0.0
    %259 = vmatprep.subr.mxu0 0.0
    %260 = vmatpush1.msra.mxu0 0.0
    %261 = vmatprep.subr.mxu0 0.0
    %262 = vmatpush1.msra.mxu0 0.0
    %263 = vmatprep.subr.mxu0 0.0
    %264 = vmatpush1.msra.mxu0 0.0
    %265 = vmatprep.subr.mxu0 0.0
    %266 = vmatpush1.msra.mxu0 0.0
    %267 = vmatprep.subr.mxu0 0.0
    %268 = vmatpush1.msra.mxu0 0.0
    %269 = vmatprep.subr.mxu0 0.0
    %270 = vmatpush1.msra.mxu0 0.0
    %271 = vmatprep.subr.mxu0 0.0
    %272 = vmatpush1.msra.mxu0 0.0
    %273 = vmatprep.subr.mxu0 0.0
    %274 = vmatpush1.msra.mxu0 0.0
    %275 = vmatprep.subr.mxu0 0.0
    %276 = vmatpush1.msra.mxu0 0.0
    %277 = vmatprep.subr.mxu0 0.0
    %278 = vmatpush1.msra.mxu0 0.0
    %279 = vmatprep.subr.mxu0 0.0
    %280 = vmatpush1.msra.mxu0 0.0
    %281 = vmatprep.subr.mxu0 0.0
    %282 = vmatpush1.msra.mxu0 0.0
    %283 = vmatprep.subr.mxu0 0.0
    %284 = vmatpush1.msra.mxu0 0.0
    %285 = vmatprep.subr.mxu0 0.0
    %286 = vmatpush1.msra.mxu0 0.0
    %287 = vmatprep.subr.mxu0 0.0
    %288 = vmatpush1.msra.mxu0 0.0
    %289 = vmatprep.subr.mxu0 0.0
    %290 = vmatpush1.msra.mxu0 0.0
    %291 = vmatprep.subr.mxu0 0.0
    %292 = vmatpush1.msra.mxu0 0.0
    %293 = vmatprep.subr.mxu0 0.0
    %294 = vmatpush1.msra.mxu0 0.0
    %295 = vmatprep.subr.mxu0 0.0
    %296 = vmatpush1.msra.mxu0 0.0
    %297 = vmatprep.mubr.f32.mxu0 0.0
    %298 = vmatmul.mubr.f32.gmra.mrb[0].mxu0 %v231
    %v299 = vpop.f32.mrb[0].mxu0
    %v300 = vadd.f32 %v226, %v299
    %v301 = vpop.f32.mrb[0].mxu0
    %302 = vdwg.mxu0
    %v303 = vld [vmem:[%s6] sm:$0x1]
    %v305 = vlaneseq
    %v306 = vshrl.u32 %v305, 7
    %v307 = vsub.s32 0, %v306
    %v308 = vrot.slane %v303, %v307
    %v310 = vadd.f32 %v300, %v308
    %v311 = vmax.f32 %v310, 0.0
    %v312 = vld [vmem:[%s7] sm:$0xff]
    %v313 = vld [vmem:[%s7 + $0x8] sm:$0xff]
    %v314 = vld [vmem:[%s7 + $0x10] sm:$0xff]
    %v315 = vld [vmem:[%s7 + $0x18] sm:$0xff]
    %v316 = vld [vmem:[%s8] sm:$0x3]
    %v318 = vlaneseq
    %v319 = vshrl.u32 %v318, 7
    %v320 = vsub.s32 0, %v319
    %v321 = vrot.slane %v316, %v320
    %v322 = vlaneseq
    %v323 = vshrl.u32 %v322, 7
    %v324 = vsub.s32 1, %v323
    %v325 = vrot.slane %v316, %v324
    %vm328 = vcmask 130048
    %v330 = vsel %vm328, %v311, 0
    %332 = vmatprep.subr.mxu0 %v313
    %333 = vmatpush1.msra.mxu0 %v312
    %334 = vmatprep.subr.mxu0 %v315
    %335 = vmatpush1.msra.mxu0 %v314
    %336 = vmatprep.subr.mxu0 0.0
    %337 = vmatpush1.msra.mxu0 0.0
    %338 = vmatprep.subr.mxu0 0.0
    %339 = vmatpush1.msra.mxu0 0.0
    %340 = vmatprep.subr.mxu0 0.0
    %341 = vmatpush1.msra.mxu0 0.0
    %342 = vmatprep.subr.mxu0 0.0
    %343 = vmatpush1.msra.mxu0 0.0
    %344 = vmatprep.subr.mxu0 0.0
    %345 = vmatpush1.msra.mxu0 0.0
    %346 = vmatprep.subr.mxu0 0.0
    %347 = vmatpush1.msra.mxu0 0.0
    %348 = vmatprep.subr.mxu0 0.0
    %349 = vmatpush1.msra.mxu0 0.0
    %350 = vmatprep.subr.mxu0 0.0
    %351 = vmatpush1.msra.mxu0 0.0
    %352 = vmatprep.subr.mxu0 0.0
    %353 = vmatpush1.msra.mxu0 0.0
    %354 = vmatprep.subr.mxu0 0.0
    %355 = vmatpush1.msra.mxu0 0.0
    %356 = vmatprep.subr.mxu0 0.0
    %357 = vmatpush1.msra.mxu0 0.0
    %358 = vmatprep.subr.mxu0 0.0
    %359 = vmatpush1.msra.mxu0 0.0
    %360 = vmatprep.subr.mxu0 0.0
    %361 = vmatpush1.msra.mxu0 0.0
    %362 = vmatprep.subr.mxu0 0.0
    %363 = vmatpush1.msra.mxu0 0.0
    %364 = vmatprep.subr.mxu0 0.0
    %365 = vmatpush1.msra.mxu0 0.0
    %366 = vmatprep.subr.mxu0 0.0
    %367 = vmatpush1.msra.mxu0 0.0
    %368 = vmatprep.subr.mxu0 0.0
    %369 = vmatpush1.msra.mxu0 0.0
    %370 = vmatprep.subr.mxu0 0.0
    %371 = vmatpush1.msra.mxu0 0.0
    %372 = vmatprep.subr.mxu0 0.0
    %373 = vmatpush1.msra.mxu0 0.0
    %374 = vmatprep.subr.mxu0 0.0
    %375 = vmatpush1.msra.mxu0 0.0
    %376 = vmatprep.subr.mxu0 0.0
    %377 = vmatpush1.msra.mxu0 0.0
    %378 = vmatprep.subr.mxu0 0.0
    %379 = vmatpush1.msra.mxu0 0.0
    %380 = vmatprep.subr.mxu0 0.0
    %381 = vmatpush1.msra.mxu0 0.0
    %382 = vmatprep.subr.mxu0 0.0
    %383 = vmatpush1.msra.mxu0 0.0
    %384 = vmatprep.subr.mxu0 0.0
    %385 = vmatpush1.msra.mxu0 0.0
    %386 = vmatprep.subr.mxu0 0.0
    %387 = vmatpush1.msra.mxu0 0.0
    %388 = vmatprep.subr.mxu0 0.0
    %389 = vmatpush1.msra.mxu0 0.0
    %390 = vmatprep.subr.mxu0 0.0
    %391 = vmatpush1.msra.mxu0 0.0
    %392 = vmatprep.subr.mxu0 0.0
    %393 = vmatpush1.msra.mxu0 0.0
    %394 = vmatprep.subr.mxu0 0.0
    %395 = vmatpush1.msra.mxu0 0.0
    %396 = vmatprep.mubr.f32.mxu0 0.0
    %397 = vmatmul.mubr.f32.gmra.mrb[0].mxu0 %v330
    %v398 = vpop.f32.mrb[0].mxu0
    %v399 = vadd.f32 %v321, %v398
    %v400 = vpop.f32.mrb[0].mxu0
    %v401 = vadd.f32 %v325, %v400
    %402 = vdwg.mxu0
    %v403 = vxor.u32 %v399, 2147483648
    %v404 = vxor.u32 %v401, 2147483648
    %v405 = vmul.f32 %v403, 1.442695
    %v406 = vpow.pop %v405
    %v407 = vmul.f32 %v404, 1.442695
    %v408 = vpow.pop %v407
    %v409 = vadd.f32 %v406, 1.0
    %v410 = vadd.f32 %v408, 1.0
    %v411 = vrcp.pop %v409
    %v412 = vmul.f32 1.0, %v411
    %v413 = vrcp.pop %v410
    %v414 = vmul.f32 1.0, %v413
    %v417 = vcombine.low %v412, %v414
    %v419 = vunpack.c.l.s4 1966171168
    %v420 = vunpack.c.0.s8 %v419
    %v421 = vlaneseq
    %v422 = vshrl.u32 %v421, 7
    %v423 = vsub.s32 %v420, %v422
    %v424 = vrot.slane %v417, %v423
    %v425 = vcombine.high %v424, %v424
    %v427 = vunpack.c.l.s4 1966171168
    %v428 = vunpack.c.0.s8 %v427
    %v429 = vlaneseq
    %v430 = vshrl.u32 %v429, 7
    %v431 = vsub.s32 %v428, %v430
    %v432 = vrot.slane %v424, %v431
    %v434 = vunpack.c.l.s4 1966171168
    %v435 = vunpack.c.0.s8 %v434
    %v436 = vlaneseq
    %v437 = vshrl.u32 %v436, 7
    %v438 = vsub.s32 %v435, %v437
    %v439 = vrot.slane %v425, %v438
    %v440 = vlaneseq
    %v441 = vshrl.u32 %v440, 7
    %v442 = vsub.s32 0, %v441
    %v443 = vrot.slane %v432, %v442
    %v444 = vlaneseq
    %v445 = vshrl.u32 %v444, 7
    %v446 = vsub.s32 1, %v445
    %v447 = vrot.slane %v432, %v446
    %v448 = vlaneseq
    %v449 = vshrl.u32 %v448, 7
    %v450 = vsub.s32 0, %v449
    %v451 = vrot.slane %v439, %v450
    %v452 = vlaneseq
    %v453 = vshrl.u32 %v452, 7
    %v454 = vsub.s32 1, %v453
    %v455 = vrot.slane %v439, %v454
    %v462 = vcombine.high %v47, %v47
    %v463 = vcombine.high %v48, %v48
    %v466 = vmul.f32 %v443, %v47
    %v467 = vmul.f32 %v447, %v462
    %v468 = vmul.f32 %v451, %v48
    %v469 = vmul.f32 %v455, %v463
    %v474 = vcombine.low %v466, %v467
    %v475 = vcombine.low %v468, %v469
    %478 = vst [vmem:[#allocation6] sm:$0xff] %v474
    %479 = vst [vmem:[#allocation6 + $0x8] sm:$0xff] %v475
    // Predicated region
    $region42: #{tpu_custom_call.1} parent=1 // pred_check
      _
    $region43: #{tpu_custom_call.1} parent=1 // pred_check_branch
      %481 = sbr.rel (0) target = $region45
    $region44: #{tpu_custom_call.1} parent=1 // pred_region
      %s483 = ssub.s32 256, 256
      %484 = vsyncadd [#allocation4], %s483
      %s485 = sshll.u32 [#allocation6], 4
      %s486 = int_to_ptr.vmem [resolvable:$true] %s485
      %491 = dma.vmem_to_hbm [thread:$0]  %s486, 256, %s9, [#allocation4], 128, 128, 8
    $region45: #{tpu_custom_call.1} parent=1 // pred_fallthru
      _
    // Predicated region
    $region46: #{tpu_custom_call.1} parent=1 // pred_check
      _
    $region47: #{tpu_custom_call.1} parent=1 // pred_check_branch
      %493 = sbr.rel (0) target = $region49
    $region48: #{tpu_custom_call.1} parent=1 // pred_region
      %494 = dma.done [#allocation4], 256
    $region49: #{tpu_custom_call.1} parent=1 // pred_fallthru
      _
    %495 = vsyncpa [#allocation4], 1
    %496 = vsyncpa [#allocation5], 1

</llo_original>
